<compile_context>
chip_gen: v6e
topology: v6e:2x2x1
jax: 0.10.0
libtpu: 0.0.40
codegen_flags: <defaults>
</compile_context>

<pallas_src>
import functools

import jax
import jax.numpy as jnp
from jax.experimental import pallas as pl
from jax.experimental.pallas import tpu as pltpu


def _round_up(x, m):
    return ((x + m - 1) // m) * m


def _qnet_kernel(x_ref, w1_ref, w2_ref, w3_ref, b_ref, o_ref):
    """Fused fc1->relu->fc2->relu->fc3 on one (TB, state_dim) batch tile."""
    fc = w1_ref.shape[1]        # fc_units
    n_pad = o_ref.shape[1]      # lane-padded action width (>= action_dim)

    b1 = b_ref[0:1, :fc]
    b2 = b_ref[1:2, :fc]
    b3 = b_ref[2:3, :n_pad]

    # fc1 -> relu  (bf16 operands on the MXU, f32 accumulation + f32 VPU math)
    x = x_ref[...].astype(jnp.bfloat16)
    h1 = jnp.dot(x, w1_ref[...], preferred_element_type=jnp.float32) + b1
    h1 = jnp.maximum(h1, 0.0)

    # fc2 -> relu
    h2 = jnp.dot(h1.astype(jnp.bfloat16), w2_ref[...],
                 preferred_element_type=jnp.float32) + b2
    h2 = jnp.maximum(h2, 0.0)

    # fc3 (no activation), lane-dense (TB, 128) store
    o_ref[...] = (
        jnp.dot(h2.astype(jnp.bfloat16), w3_ref[...],
                preferred_element_type=jnp.float32) + b3
    ).astype(o_ref.dtype)


def qnetwork_forward(state, params, *, block_b=256):
    """Fused 3-layer MLP forward.

    state:  (B, state_dim) float32
    params: (w1, b1, w2, b2, w3, b3) with weights (in, out) in bf16,
            biases (1, out) in f32.
    Returns (B, action_dim) float32 Q-values.
    """
    w1, b1, w2, b2, w3, b3 = params
    B, state_dim = state.shape
    fc_units = w1.shape[1]
    action_dim = w3.shape[1]

    # --- pad fc3 to a lane-dense output width (multiple of 128) ------------
    n_pad = _round_up(action_dim, 128)
    bias_w = max(fc_units, n_pad)
    w3p = jnp.zeros((fc_units, n_pad), w3.dtype).at[:, :action_dim].set(w3)
    b3p = jnp.zeros((1, n_pad), b3.dtype).at[:, :action_dim].set(b3)

    def _pad_bias(b):
        return jnp.zeros((1, bias_w), jnp.float32).at[:, :b.shape[1]].set(b)

    b_cat = jnp.concatenate([_pad_bias(b1), _pad_bias(b2), _pad_bias(b3p)], axis=0)

    # --- batch tiling -------------------------------------------------------
    tb = min(block_b, _round_up(B, 8))      # sublane-aligned tile height
    b_padded = _round_up(B, tb)
    xs = state if b_padded == B else jnp.pad(state, ((0, b_padded - B), (0, 0)))
    grid = (b_padded // tb,)

    out = pl.pallas_call(
        _qnet_kernel,
        out_shape=jax.ShapeDtypeStruct((b_padded, n_pad), jnp.float32),
        grid_spec=pltpu.PrefetchScalarGridSpec(
            num_scalar_prefetch=0,
            grid=grid,
            in_specs=[
                # state tile moves with the grid index
                pl.BlockSpec((tb, state_dim), lambda i: (i, 0)),
                # weights/biases: constant block index -> VMEM-resident,
                # DMA'd only once regardless of batch size
                pl.BlockSpec(w1.shape, lambda i: (0, 0)),
                pl.BlockSpec(w2.shape, lambda i: (0, 0)),
                pl.BlockSpec((fc_units, n_pad), lambda i: (0, 0)),
                pl.BlockSpec((3, bias_w), lambda i: (0, 0)),
            ],
            out_specs=pl.BlockSpec((tb, n_pad), lambda i: (i, 0)),
        ),
        compiler_params=pltpu.CompilerParams(
            dimension_semantics=("parallel",),
        ),
    )(xs, w1, w2, w3p, b_cat)

    return out[:B, :action_dim]


def init_qnetwork_params(key, state_dim, action_dim, fc_units=128):
    """nn.Linear-style U(-1/sqrt(fan_in), 1/sqrt(fan_in)) init.

    Weights stored as (in, out) in bfloat16; biases as (1, out) in float32.
    """
    ks = jax.random.split(key, 6)

    def linear(kw, kb, fan_in, fan_out):
        bound = 1.0 / jnp.sqrt(jnp.float32(fan_in))
        w = jax.random.uniform(kw, (fan_in, fan_out), jnp.float32, -bound, bound)
        b = jax.random.uniform(kb, (1, fan_out), jnp.float32, -bound, bound)
        return w.astype(jnp.bfloat16), b

    w1, b1 = linear(ks[0], ks[1], state_dim, fc_units)
    w2, b2 = linear(ks[2], ks[3], fc_units, fc_units)
    w3, b3 = linear(ks[4], ks[5], fc_units, action_dim)
    return (w1, b1, w2, b2, w3, b3)


def _ref_forward(state, params):
    """Plain-JAX reference with identical bf16-weight / f32-accumulate math."""
    w1, b1, w2, b2, w3, b3 = params
    h = jnp.dot(state.astype(jnp.bfloat16), w1,
                preferred_element_type=jnp.float32) + b1
    h = jnp.maximum(h, 0.0)
    h = jnp.dot(h.astype(jnp.bfloat16), w2,
                preferred_element_type=jnp.float32) + b2
    h = jnp.maximum(h, 0.0)
    return jnp.dot(h.astype(jnp.bfloat16), w3,
                   preferred_element_type=jnp.float32) + b3


if __name__ == "__main__":
    # CartPole: state_dim=4, action_dim=2, fc_units=128.
    # Batch = 512 (replay-minibatch scale) -> 1-D grid of two 256-row tiles.
    state_dim, action_dim, fc_units, batch = 4, 2, 128, 512

    key = jax.random.PRNGKey(0)
    pkey, xkey = jax.random.split(key)
    params = init_qnetwork_params(pkey, state_dim, action_dim, fc_units)
    state = jax.random.normal(xkey, (batch, state_dim), jnp.float32)

    fwd = jax.jit(functools.partial(qnetwork_forward, block_b=256))
    out = jax.block_until_ready(fwd(state, params))

    ref = _ref_forward(state, params)
    assert out.shape == (batch, action_dim)
    assert jnp.allclose(out, ref, atol=1e-3, rtol=1e-3), float(
        jnp.max(jnp.abs(out - ref))
    )

    print("KERNEL_OK")
</pallas_src>

<mosaic_0001>
module attributes {stable_mosaic.version = 11 : i64} {
  func.func @_qnet_kernel(%arg0: i32, %arg1: memref<256x4xf32, #tpu.memory_space<vmem>>, %arg2: memref<4x128xbf16, #tpu.memory_space<vmem>>, %arg3: memref<128x128xbf16, #tpu.memory_space<vmem>>, %arg4: memref<128x128xbf16, #tpu.memory_space<vmem>>, %arg5: memref<3x128xf32, #tpu.memory_space<vmem>>, %arg6: memref<256x128xf32, #tpu.memory_space<vmem>>) attributes {dimension_semantics = [#tpu.dimension_semantics<parallel>], iteration_bounds = array<i64: 2>, scalar_prefetch = 0 : i64, scratch_operands = 0 : i64, tpu.core_type = #tpu.core_type<tc>, window_params = [{transform_indices = @transform_0, window_bounds = array<i64: 256, 4>}, {pipeline_mode = #tpu.pipeline_mode<synchronous>, transform_indices = @transform_1, window_bounds = array<i64: 4, 128>}, {pipeline_mode = #tpu.pipeline_mode<synchronous>, transform_indices = @transform_2, window_bounds = array<i64: 128, 128>}, {pipeline_mode = #tpu.pipeline_mode<synchronous>, transform_indices = @transform_3, window_bounds = array<i64: 128, 128>}, {pipeline_mode = #tpu.pipeline_mode<synchronous>, transform_indices = @transform_4, window_bounds = array<i64: 3, 128>}, {transform_indices = @transform_5, window_bounds = array<i64: 256, 128>}]} {
    %c0 = arith.constant 0 : index
    %c0_0 = arith.constant 0 : index
    %0 = vector.load %arg5[%c0, %c0_0] : memref<3x128xf32, #tpu.memory_space<vmem>>, vector<1x128xf32>
    %c1 = arith.constant 1 : index
    %c0_1 = arith.constant 0 : index
    %1 = vector.load %arg5[%c1, %c0_1] : memref<3x128xf32, #tpu.memory_space<vmem>>, vector<1x128xf32>
    %c2 = arith.constant 2 : index
    %c0_2 = arith.constant 0 : index
    %2 = vector.load %arg5[%c2, %c0_2] : memref<3x128xf32, #tpu.memory_space<vmem>>, vector<1x128xf32>
    %c0_3 = arith.constant 0 : index
    %c0_4 = arith.constant 0 : index
    %3 = vector.load %arg1[%c0_3, %c0_4] : memref<256x4xf32, #tpu.memory_space<vmem>>, vector<256x4xf32>
    %4 = arith.truncf %3 : vector<256x4xf32> to vector<256x4xbf16>
    %c0_5 = arith.constant 0 : index
    %c0_6 = arith.constant 0 : index
    %5 = vector.load %arg2[%c0_5, %c0_6] : memref<4x128xbf16, #tpu.memory_space<vmem>>, vector<4x128xbf16>
    %cst = arith.constant dense<0.000000e+00> : vector<256x128xf32>
    %6 = tpu.matmul %4, %5, %cst {dimension_numbers = #tpu.dot_dimension_numbers<[1], [0], [0], [1], [0, 0, 1, 1], [], []>} : vector<256x4xbf16>, vector<4x128xbf16>, vector<256x128xf32> -> vector<256x128xf32>
    %7 = vector.broadcast %0 : vector<1x128xf32> to vector<256x128xf32>
    %8 = arith.addf %6, %7 : vector<256x128xf32>
    %cst_7 = arith.constant 0.000000e+00 : f32
    %9 = vector.broadcast %cst_7 : f32 to vector<256x128xf32>
    %10 = arith.maximumf %8, %9 : vector<256x128xf32>
    %11 = arith.truncf %10 : vector<256x128xf32> to vector<256x128xbf16>
    %c0_8 = arith.constant 0 : index
    %c0_9 = arith.constant 0 : index
    %12 = vector.load %arg3[%c0_8, %c0_9] : memref<128x128xbf16, #tpu.memory_space<vmem>>, vector<128x128xbf16>
    %cst_10 = arith.constant dense<0.000000e+00> : vector<256x128xf32>
    %13 = tpu.matmul %11, %12, %cst_10 {dimension_numbers = #tpu.dot_dimension_numbers<[1], [0], [0], [1], [0, 0, 1, 1], [], []>} : vector<256x128xbf16>, vector<128x128xbf16>, vector<256x128xf32> -> vector<256x128xf32>
    %14 = vector.broadcast %1 : vector<1x128xf32> to vector<256x128xf32>
    %15 = arith.addf %13, %14 : vector<256x128xf32>
    %cst_11 = arith.constant 0.000000e+00 : f32
    %16 = vector.broadcast %cst_11 : f32 to vector<256x128xf32>
    %17 = arith.maximumf %15, %16 : vector<256x128xf32>
    %18 = arith.truncf %17 : vector<256x128xf32> to vector<256x128xbf16>
    %c0_12 = arith.constant 0 : index
    %c0_13 = arith.constant 0 : index
    %19 = vector.load %arg4[%c0_12, %c0_13] : memref<128x128xbf16, #tpu.memory_space<vmem>>, vector<128x128xbf16>
    %cst_14 = arith.constant dense<0.000000e+00> : vector<256x128xf32>
    %20 = tpu.matmul %18, %19, %cst_14 {dimension_numbers = #tpu.dot_dimension_numbers<[1], [0], [0], [1], [0, 0, 1, 1], [], []>} : vector<256x128xbf16>, vector<128x128xbf16>, vector<256x128xf32> -> vector<256x128xf32>
    %21 = vector.broadcast %2 : vector<1x128xf32> to vector<256x128xf32>
    %22 = arith.addf %20, %21 : vector<256x128xf32>
    %c0_15 = arith.constant 0 : index
    %c0_16 = arith.constant 0 : index
    %23 = vector.load %arg6[%c0_15, %c0_16] : memref<256x128xf32, #tpu.memory_space<vmem>>, vector<256x128xf32>
    tpu.vector_store %arg6[%c0_15, %c0_16], %22 {strides = array<i32>} : memref<256x128xf32, #tpu.memory_space<vmem>>, vector<256x128xf32>,
    return
  }
  func.func @transform_0(%arg0: i32) -> (i32, i32) {
    %c0_i32 = arith.constant 0 : i32
    %c0_i32_0 = arith.constant 0 : i32
    return %arg0, %c0_i32 : i32, i32
  }
  func.func @transform_1(%arg0: i32) -> (i32, i32) {
    %c0_i32 = arith.constant 0 : i32
    %c0_i32_0 = arith.constant 0 : i32
    %c0_i32_1 = arith.constant 0 : i32
    return %c0_i32, %c0_i32_0 : i32, i32
  }
  func.func @transform_2(%arg0: i32) -> (i32, i32) {
    %c0_i32 = arith.constant 0 : i32
    %c0_i32_0 = arith.constant 0 : i32
    %c0_i32_1 = arith.constant 0 : i32
    return %c0_i32, %c0_i32_0 : i32, i32
  }
  func.func @transform_3(%arg0: i32) -> (i32, i32) {
    %c0_i32 = arith.constant 0 : i32
    %c0_i32_0 = arith.constant 0 : i32
    %c0_i32_1 = arith.constant 0 : i32
    return %c0_i32, %c0_i32_0 : i32, i32
  }
  func.func @transform_4(%arg0: i32) -> (i32, i32) {
    %c0_i32 = arith.constant 0 : i32
    %c0_i32_0 = arith.constant 0 : i32
    %c0_i32_1 = arith.constant 0 : i32
    return %c0_i32, %c0_i32_0 : i32, i32
  }
  func.func @transform_5(%arg0: i32) -> (i32, i32) {
    %c0_i32 = arith.constant 0 : i32
    %c0_i32_0 = arith.constant 0 : i32
    return %arg0, %c0_i32 : i32, i32
  }
}

</mosaic_0001>

<llo_original>
// kernel: qnetwork_forward.1
$region0: #{qnetwork_forward.1}
  #allocation0 [shape = 'u32[]', space=smem, size = 0x4, offset = 0x4, fixed_abs, tag = 'smem constant byte address 0x4 - core index']
  #allocation1 [shape = 'u32[144,128]{1,0:T(1,128)}', space=vmem, size = 0x12000, scoped, tag = 'internal scratch']
  %s0 = inlined_call_operand.vmem [shape: f32[512,4], index: 0, kind: input, shape index: {}]
  %s1 = inlined_call_operand.vmem [shape: bf16[4,128], index: 1, kind: input, shape index: {}]
  %s2 = inlined_call_operand.vmem [shape: bf16[128,128], index: 2, kind: input, shape index: {}]
  %s3 = inlined_call_operand.vmem [shape: bf16[128,128], index: 3, kind: input, shape index: {}]
  %s4 = inlined_call_operand.vmem [shape: f32[3,128], index: 4, kind: input, shape index: {}]
  %s5 = inlined_call_operand.vmem [shape: f32[512,128], index: 5, kind: output, shape index: {}]
  %s6 = sld [smem:[#allocation0]]
  $region53: #{qnetwork_forward.1} parent=0
    _
  %s8 = ssub.s32 1, %s6
  %s9 = scalar_select 0, %s8, %s6
  loop: start=0, step=1, limit=4
  $region2: #{qnetwork_forward.1} parent=0 // loop_pre_header
    _
  $region3: #{qnetwork_forward.1} parent=0 // loop_header
    %s11 = sphi 0, %s15
    %p12 = scmp.ge.s32.totalorder %s11, 4
    %s21 = sphi 0, %s23
    %s24 = sphi 0, %s21
    %s25 = sphi 0, %s24
    %s41 = sphi 0, %s25
    %s45 = sphi 0, %s45
    %s47 = sphi 0, %s45
    %s48 = sphi 0, %s47
    %s62 = sphi 0, %s48
    %s66 = sphi 0, %s66
    %s68 = sphi 0, %s66
    %s69 = sphi 0, %s68
    %s83 = sphi 0, %s69
    %s87 = sphi 0, %s87
    %s89 = sphi 0, %s87
    %s90 = sphi 0, %s89
    %s104 = sphi 0, %s90
    %s108 = sphi 0, %s108
    %s110 = sphi 0, %s108
    %s111 = sphi 0, %s110
    %s125 = sphi 0, %s111
    %s131 = sphi 0, %s133
    %s134 = sphi 0, %s131
    %s135 = sphi 0, %s134
    %s151 = sphi 0, %s135
  $region4: #{qnetwork_forward.1} parent=0 // loop_header_branch
    %14 = sbr.rel (%p12) target = $region8
  $region5: #{qnetwork_forward.1} parent=0 // loop_body
    %s16 = ssub.s32 %s11, 1
    %s17 = ssub.s32 %s11, 2
    %s18 = sadd.s32 %s11, 1
    %s19 = ssub.s32 %s11, %s18
    %p20 = scmp.eq.s32.totalorder %s19, 0
    %s22 = sadd.s32 %s21, 1
    %s23 = scalar_select %p20, %s21, %s22
    %p26 = pneg %p20
    %p27 = scmp.eq.s32.totalorder %s11, 1
    %p28 = por %p26, %p27
    %p29 = scmp.ne.s32.totalorder %s21, %s24
    %p30 = scmp.eq.s32.totalorder %s11, 0
    %p31 = por %p29, %p30
    %p32 = scmp.ne.s32.totalorder %s21, %s24
    %p33 = scmp.eq.s32.totalorder %s16, 1
    %p34 = por %p32, %p33
    %p35 = scmp.ne.s32.totalorder %s24, %s25
    %p36 = scmp.eq.s32.totalorder %s16, 0
    %p37 = por %p35, %p36
    %p38 = scmp.ne.s32.totalorder %s24, %s25
    %p39 = scmp.eq.s32.totalorder %s17, 1
    %p40 = por %p38, %p39
    %p42 = scmp.ne.s32.totalorder %s25, %s41
    %p43 = scmp.eq.s32.totalorder %s17, 0
    %p44 = por %p42, %p43
    %s46 = sadd.s32 %s45, 1
    %p49 = scmp.eq.s32.totalorder %s11, 1
    %p50 = scmp.ne.s32.totalorder %s45, %s47
    %p51 = scmp.eq.s32.totalorder %s11, 0
    %p52 = por %p50, %p51
    %p53 = scmp.ne.s32.totalorder %s45, %s47
    %p54 = scmp.eq.s32.totalorder %s16, 1
    %p55 = por %p53, %p54
    %p56 = scmp.ne.s32.totalorder %s47, %s48
    %p57 = scmp.eq.s32.totalorder %s16, 0
    %p58 = por %p56, %p57
    %p59 = scmp.ne.s32.totalorder %s47, %s48
    %p60 = scmp.eq.s32.totalorder %s17, 1
    %p61 = por %p59, %p60
    %p63 = scmp.ne.s32.totalorder %s48, %s62
    %p64 = scmp.eq.s32.totalorder %s17, 0
    %p65 = por %p63, %p64
    %s67 = sadd.s32 %s66, 1
    %p70 = scmp.eq.s32.totalorder %s11, 1
    %p71 = scmp.ne.s32.totalorder %s66, %s68
    %p72 = scmp.eq.s32.totalorder %s11, 0
    %p73 = por %p71, %p72
    %p74 = scmp.ne.s32.totalorder %s66, %s68
    %p75 = scmp.eq.s32.totalorder %s16, 1
    %p76 = por %p74, %p75
    %p77 = scmp.ne.s32.totalorder %s68, %s69
    %p78 = scmp.eq.s32.totalorder %s16, 0
    %p79 = por %p77, %p78
    %p80 = scmp.ne.s32.totalorder %s68, %s69
    %p81 = scmp.eq.s32.totalorder %s17, 1
    %p82 = por %p80, %p81
    %p84 = scmp.ne.s32.totalorder %s69, %s83
    %p85 = scmp.eq.s32.totalorder %s17, 0
    %p86 = por %p84, %p85
    %s88 = sadd.s32 %s87, 1
    %p91 = scmp.eq.s32.totalorder %s11, 1
    %p92 = scmp.ne.s32.totalorder %s87, %s89
    %p93 = scmp.eq.s32.totalorder %s11, 0
    %p94 = por %p92, %p93
    %p95 = scmp.ne.s32.totalorder %s87, %s89
    %p96 = scmp.eq.s32.totalorder %s16, 1
    %p97 = por %p95, %p96
    %p98 = scmp.ne.s32.totalorder %s89, %s90
    %p99 = scmp.eq.s32.totalorder %s16, 0
    %p100 = por %p98, %p99
    %p101 = scmp.ne.s32.totalorder %s89, %s90
    %p102 = scmp.eq.s32.totalorder %s17, 1
    %p103 = por %p101, %p102
    %p105 = scmp.ne.s32.totalorder %s90, %s104
    %p106 = scmp.eq.s32.totalorder %s17, 0
    %p107 = por %p105, %p106
    %s109 = sadd.s32 %s108, 1
    %p112 = scmp.eq.s32.totalorder %s11, 1
    %p113 = scmp.ne.s32.totalorder %s108, %s110
    %p114 = scmp.eq.s32.totalorder %s11, 0
    %p115 = por %p113, %p114
    %p116 = scmp.ne.s32.totalorder %s108, %s110
    %p117 = scmp.eq.s32.totalorder %s16, 1
    %p118 = por %p116, %p117
    %p119 = scmp.ne.s32.totalorder %s110, %s111
    %p120 = scmp.eq.s32.totalorder %s16, 0
    %p121 = por %p119, %p120
    %p122 = scmp.ne.s32.totalorder %s110, %s111
    %p123 = scmp.eq.s32.totalorder %s17, 1
    %p124 = por %p122, %p123
    %p126 = scmp.ne.s32.totalorder %s111, %s125
    %p127 = scmp.eq.s32.totalorder %s17, 0
    %p128 = por %p126, %p127
    %s129 = ssub.s32 %s11, %s18
    %p130 = scmp.eq.s32.totalorder %s129, 0
    %s132 = sadd.s32 %s131, 1
    %s133 = scalar_select %p130, %s131, %s132
    %p136 = pneg %p130
    %p137 = scmp.eq.s32.totalorder %s11, 1
    %p138 = por %p136, %p137
    %p139 = scmp.ne.s32.totalorder %s131, %s134
    %p140 = scmp.eq.s32.totalorder %s11, 0
    %p141 = por %p139, %p140
    %p142 = scmp.ne.s32.totalorder %s131, %s134
    %p143 = scmp.eq.s32.totalorder %s16, 1
    %p144 = por %p142, %p143
    %p145 = scmp.ne.s32.totalorder %s134, %s135
    %p146 = scmp.eq.s32.totalorder %s16, 0
    %p147 = por %p145, %p146
    %p148 = scmp.ne.s32.totalorder %s134, %s135
    %p149 = scmp.eq.s32.totalorder %s17, 1
    %p150 = por %p148, %p149
    %p152 = scmp.ne.s32.totalorder %s135, %s151
    %p153 = scmp.eq.s32.totalorder %s17, 0
    %p154 = por %p152, %p153
    %p155 = scmp.le.s32.totalorder 1, %s11
    %p156 = scmp.lt.s32.totalorder %s11, 3
    %p157 = pnand %p155, %p156
    %p158 = pneg %p157
    // Predicated region
    $region9: #{qnetwork_forward.1} parent=5 // pred_check
      _
    $region10: #{qnetwork_forward.1} parent=5 // pred_check_branch
      %160 = sbr.rel (%p157) target = $region12
    $region11: #{qnetwork_forward.1} parent=5 // pred_region
      %s161 = ssub.s32 %s11, 1
      // Predicated region
      $region13: #{qnetwork_forward.1} parent=11 // pred_check
        %p162 = pneg %p58
      $region14: #{qnetwork_forward.1} parent=11 // pred_check_branch
        %164 = sbr.rel (%p162) target = $region16
      $region15: #{qnetwork_forward.1} parent=11 // pred_region
        _
      $region16: #{qnetwork_forward.1} parent=11 // pred_fallthru
        _
      // Predicated region
      $region17: #{qnetwork_forward.1} parent=11 // pred_check
        %p165 = pneg %p79
      $region18: #{qnetwork_forward.1} parent=11 // pred_check_branch
        %167 = sbr.rel (%p165) target = $region20
      $region19: #{qnetwork_forward.1} parent=11 // pred_region
        _
      $region20: #{qnetwork_forward.1} parent=11 // pred_fallthru
        _
      // Predicated region
      $region21: #{qnetwork_forward.1} parent=11 // pred_check
        %p168 = pneg %p100
      $region22: #{qnetwork_forward.1} parent=11 // pred_check_branch
        %170 = sbr.rel (%p168) target = $region24
      $region23: #{qnetwork_forward.1} parent=11 // pred_region
        _
      $region24: #{qnetwork_forward.1} parent=11 // pred_fallthru
        _
      // Predicated region
      $region25: #{qnetwork_forward.1} parent=11 // pred_check
        %p171 = pneg %p121
      $region26: #{qnetwork_forward.1} parent=11 // pred_check_branch
        %173 = sbr.rel (%p171) target = $region28
      $region27: #{qnetwork_forward.1} parent=11 // pred_region
        _
      $region28: #{qnetwork_forward.1} parent=11 // pred_fallthru
        _
    $region12: #{qnetwork_forward.1} parent=5 // pred_fallthru
      _
    %p174 = scmp.lt.s32.totalorder %s11, 2
    // Predicated region
    $region29: #{qnetwork_forward.1} parent=5 // pred_check
      %p175 = pneg %p174
    $region30: #{qnetwork_forward.1} parent=5 // pred_check_branch
      %177 = sbr.rel (%p175) target = $region32
    $region31: #{qnetwork_forward.1} parent=5 // pred_region
      // Predicated region
      $region33: #{qnetwork_forward.1} parent=31 // pred_check
        %p178 = pneg %p31
      $region34: #{qnetwork_forward.1} parent=31 // pred_check_branch
        %180 = sbr.rel (%p178) target = $region36
      $region35: #{qnetwork_forward.1} parent=31 // pred_region
        %s181 = smul.u32 32, %s11
        %p182 = scmp.lt.s32.totalorder %s181, 63
        %s183 = scalar_select %p182, %s181, 63
        %s184 = smul.addr %s183, 8
        %s185 = scalar_lea.vmem %s0, %s184
        %s186 = smul.u32 32, %s11
      $region36: #{qnetwork_forward.1} parent=31 // pred_fallthru
        _
    $region32: #{qnetwork_forward.1} parent=5 // pred_fallthru
      _
    %p187 = scmp.le.s32.totalorder 1, %s11
    %p188 = scmp.lt.s32.totalorder %s11, 3
    %p189 = pnand %p187, %p188
    %p190 = pneg %p189
    // Predicated region
    $region37: #{qnetwork_forward.1} parent=5 // pred_check
      _
    $region38: #{qnetwork_forward.1} parent=5 // pred_check_branch
      %192 = sbr.rel (%p189) target = $region40
    $region39: #{qnetwork_forward.1} parent=5 // pred_region
      %s193 = ssub.s32 %s11, 1
      %s194 = smul.u32 32, %s16
      %p195 = scmp.lt.s32.totalorder %s194, 63
      %s196 = scalar_select %p195, %s194, 63
      %s197 = smul.addr %s196, 8
      %s198 = scalar_lea.vmem %s0, %s197
      %p199 = pneg %p37
      %p200 = pneg %p34
      %p201 = pneg %p58
      %p202 = pneg %p55
      %p203 = pneg %p79
      %p204 = pneg %p76
      %p205 = pneg %p100
      %p206 = pneg %p97
      %p207 = pneg %p121
      %p208 = pneg %p118
      %p209 = pneg %p147
      %p210 = pneg %p144
      %s211 = smul.u32 32, %s16
      %p212 = scmp.lt.s32.totalorder %s211, 63
      %s213 = scalar_select %p212, %s211, 63
      %s214 = smul.addr %s213, 8
      %s215 = scalar_lea.vmem %s5, %s214
      %s216 = smul.u32 32, %s16
      %p217 = scmp.lt.s32.totalorder %s216, 63
      %s218 = scalar_select %p217, %s216, 63
      %s219 = smul.addr %s218, 8
      %s220 = scalar_lea.vmem %s0, %s219
      %s221 = smul.u32 32, %s16
      %s222 = smul.u32 32, %s16
      %p223 = scmp.lt.s32.totalorder %s222, 63
      %s224 = scalar_select %p223, %s222, 63
      %s225 = smul.addr %s224, 8
      %s226 = scalar_lea.vmem %s5, %s225
      %s227 = smul.u32 32, %s16
      %v229 = vld [vmem:[%s4] sm:$0x1]
      %v230 = vld [vmem:[%s4 + $0x1] sm:$0x1]
      %v231 = vld [vmem:[%s4 + $0x2] sm:$0x1]
      %v232 = vld [vmem:[%s220] sm:$0xff]
      %v233 = vld [vmem:[%s220 + $0x8] sm:$0xff]
      %v234 = vld [vmem:[%s220 + $0x10] sm:$0xff]
      %v235 = vld [vmem:[%s220 + $0x18] sm:$0xff]
      %v236 = vld [vmem:[%s220 + $0x20] sm:$0xff]
      %v237 = vld [vmem:[%s220 + $0x28] sm:$0xff]
      %v238 = vld [vmem:[%s220 + $0x30] sm:$0xff]
      %v239 = vld [vmem:[%s220 + $0x38] sm:$0xff]
      %v240 = vld [vmem:[%s220 + $0x40] sm:$0xff]
      %v241 = vld [vmem:[%s220 + $0x48] sm:$0xff]
      %v242 = vld [vmem:[%s220 + $0x50] sm:$0xff]
      %v243 = vld [vmem:[%s220 + $0x58] sm:$0xff]
      %v244 = vld [vmem:[%s220 + $0x60] sm:$0xff]
      %v245 = vld [vmem:[%s220 + $0x68] sm:$0xff]
      %v246 = vld [vmem:[%s220 + $0x70] sm:$0xff]
      %v247 = vld [vmem:[%s220 + $0x78] sm:$0xff]
      %v248 = vld [vmem:[%s220 + $0x80] sm:$0xff]
      %v249 = vld [vmem:[%s220 + $0x88] sm:$0xff]
      %v250 = vld [vmem:[%s220 + $0x90] sm:$0xff]
      %v251 = vld [vmem:[%s220 + $0x98] sm:$0xff]
      %v252 = vld [vmem:[%s220 + $0xa0] sm:$0xff]
      %v253 = vld [vmem:[%s220 + $0xa8] sm:$0xff]
      %v254 = vld [vmem:[%s220 + $0xb0] sm:$0xff]
      %v255 = vld [vmem:[%s220 + $0xb8] sm:$0xff]
      %v256 = vld [vmem:[%s220 + $0xc0] sm:$0xff]
      %v257 = vld [vmem:[%s220 + $0xc8] sm:$0xff]
      %v258 = vld [vmem:[%s220 + $0xd0] sm:$0xff]
      %v259 = vld [vmem:[%s220 + $0xd8] sm:$0xff]
      %v260 = vld [vmem:[%s220 + $0xe0] sm:$0xff]
      %v261 = vld [vmem:[%s220 + $0xe8] sm:$0xff]
      %v262 = vld [vmem:[%s220 + $0xf0] sm:$0xff]
      %v263 = vld [vmem:[%s220 + $0xf8] sm:$0xff]
      %v264 = vpack.c.bf16 %v233, %v232
      %v265 = vpack.c.bf16 %v235, %v234
      %v266 = vpack.c.bf16 %v237, %v236
      %v267 = vpack.c.bf16 %v239, %v238
      %v268 = vpack.c.bf16 %v241, %v240
      %v269 = vpack.c.bf16 %v243, %v242
      %v270 = vpack.c.bf16 %v245, %v244
      %v271 = vpack.c.bf16 %v247, %v246
      %v272 = vpack.c.bf16 %v249, %v248
      %v273 = vpack.c.bf16 %v251, %v250
      %v274 = vpack.c.bf16 %v253, %v252
      %v275 = vpack.c.bf16 %v255, %v254
      %v276 = vpack.c.bf16 %v257, %v256
      %v277 = vpack.c.bf16 %v259, %v258
      %v278 = vpack.c.bf16 %v261, %v260
      %v279 = vpack.c.bf16 %v263, %v262
      %v280 = vld [vmem:[%s1] sm:$0x3]
      %v281 = vlaneseq
      %v282 = vshrl.u32 %v281, 7
      %v283 = vsub.s32 0, %v282
      %v284 = vrot.slane %v229, %v283
      %vm285 = vcmask 31744
      %v287 = vsel %vm285, %v264, 0
      %v290 = vsel %vm285, %v265, 0
      %v293 = vsel %vm285, %v266, 0
      %v296 = vsel %vm285, %v267, 0
      %v299 = vsel %vm285, %v268, 0
      %v302 = vsel %vm285, %v269, 0
      %v305 = vsel %vm285, %v270, 0
      %v308 = vsel %vm285, %v271, 0
      %v311 = vsel %vm285, %v272, 0
      %v314 = vsel %vm285, %v273, 0
      %v317 = vsel %vm285, %v274, 0
      %v320 = vsel %vm285, %v275, 0
      %v323 = vsel %vm285, %v276, 0
      %v326 = vsel %vm285, %v277, 0
      %v329 = vsel %vm285, %v278, 0
      %v332 = vsel %vm285, %v279, 0
      %vm334 = vcmask 1041408
      %v336 = vsel %vm334, %v280, 0
      %338 = vmatprep.subr.bf16.mxu0 0
      %339 = vmatpush1.bf16.msra.mxu0 0
      %340 = vmatprep.subr.bf16.mxu0 0
      %341 = vmatpush1.bf16.msra.mxu0 0
      %342 = vmatprep.subr.bf16.mxu0 0
      %343 = vmatpush1.bf16.msra.mxu0 0
      %344 = vmatprep.subr.bf16.mxu0 0
      %345 = vmatpush1.bf16.msra.mxu0 0
      %346 = vmatprep.subr.bf16.mxu0 0
      %347 = vmatpush1.bf16.msra.mxu0 0
      %348 = vmatprep.subr.bf16.mxu0 0
      %349 = vmatpush1.bf16.msra.mxu0 0
      %350 = vmatprep.subr.bf16.mxu0 0
      %351 = vmatpush1.bf16.msra.mxu0 0
      %352 = vmatprep.subr.bf16.mxu0 0
      %353 = vmatpush1.bf16.msra.mxu0 %v336
      %354 = vmatprep.subr.bf16.mxu0 0
      %355 = vmatpush2.bf16.msra.mxu0 0
      %356 = vmatprep.subr.bf16.mxu0 0
      %357 = vmatpush2.bf16.msra.mxu0 0
      %358 = vmatprep.subr.bf16.mxu0 0
      %359 = vmatpush2.bf16.msra.mxu0 0
      %360 = vmatprep.subr.bf16.mxu0 0
      %361 = vmatpush2.bf16.msra.mxu0 0
      %362 = vmatprep.subr.bf16.mxu0 0
      %363 = vmatpush2.bf16.msra.mxu0 0
      %364 = vmatprep.subr.bf16.mxu0 0
      %365 = vmatpush2.bf16.msra.mxu0 0
      %366 = vmatprep.subr.bf16.mxu0 0
      %367 = vmatpush2.bf16.msra.mxu0 0
      %368 = vmatprep.subr.bf16.mxu0 0
      %369 = vmatpush2.bf16.msra.mxu0 0
      %370 = vmatprep.mubr.bf16.mxu0 0
      %371 = vmatmul.mubr.bf16.gmra.mxu0 %v287
      %v372 = vpop.f32.mrf.mxu0
      %v373 = vadd.f32 %v284, %v372
      %v374 = vpop.f32.mrf.mxu0
      %v375 = vpop.f32.mrf.mxu0
      %v376 = vadd.f32 %v284, %v375
      %v377 = vpop.f32.mrf.mxu0
      %378 = vmatprep.mubr.bf16.mxu0 0
      %379 = vmatmul.mubr.bf16.gmra.mxu0 %v290
      %v380 = vpop.f32.mrf.mxu0
      %v381 = vadd.f32 %v284, %v380
      %v382 = vpop.f32.mrf.mxu0
      %v383 = vpop.f32.mrf.mxu0
      %v384 = vadd.f32 %v284, %v383
      %v385 = vpop.f32.mrf.mxu0
      %386 = vmatprep.mubr.bf16.mxu0 0
      %387 = vmatmul.mubr.bf16.gmra.mxu0 %v293
      %v388 = vpop.f32.mrf.mxu0
      %v389 = vadd.f32 %v284, %v388
      %v390 = vpop.f32.mrf.mxu0
      %v391 = vpop.f32.mrf.mxu0
      %v392 = vadd.f32 %v284, %v391
      %v393 = vpop.f32.mrf.mxu0
      %394 = vmatprep.mubr.bf16.mxu0 0
      %395 = vmatmul.mubr.bf16.gmra.mxu0 %v296
      %v396 = vpop.f32.mrf.mxu0
      %v397 = vadd.f32 %v284, %v396
      %v398 = vpop.f32.mrf.mxu0
      %v399 = vpop.f32.mrf.mxu0
      %v400 = vadd.f32 %v284, %v399
      %v401 = vpop.f32.mrf.mxu0
      %402 = vmatprep.mubr.bf16.mxu0 0
      %403 = vmatmul.mubr.bf16.gmra.mxu0 %v299
      %v404 = vpop.f32.mrf.mxu0
      %v405 = vadd.f32 %v284, %v404
      %v406 = vpop.f32.mrf.mxu0
      %v407 = vpop.f32.mrf.mxu0
      %v408 = vadd.f32 %v284, %v407
      %v409 = vpop.f32.mrf.mxu0
      %410 = vmatprep.mubr.bf16.mxu0 0
      %411 = vmatmul.mubr.bf16.gmra.mxu0 %v302
      %v412 = vpop.f32.mrf.mxu0
      %v413 = vadd.f32 %v284, %v412
      %v414 = vpop.f32.mrf.mxu0
      %v415 = vpop.f32.mrf.mxu0
      %v416 = vadd.f32 %v284, %v415
      %v417 = vpop.f32.mrf.mxu0
      %418 = vmatprep.mubr.bf16.mxu0 0
      %419 = vmatmul.mubr.bf16.gmra.mxu0 %v305
      %v420 = vpop.f32.mrf.mxu0
      %v421 = vadd.f32 %v284, %v420
      %v422 = vpop.f32.mrf.mxu0
      %v423 = vpop.f32.mrf.mxu0
      %v424 = vadd.f32 %v284, %v423
      %v425 = vpop.f32.mrf.mxu0
      %426 = vmatprep.mubr.bf16.mxu0 0
      %427 = vmatmul.mubr.bf16.gmra.mxu0 %v308
      %v428 = vpop.f32.mrf.mxu0
      %v429 = vadd.f32 %v284, %v428
      %v430 = vpop.f32.mrf.mxu0
      %v431 = vpop.f32.mrf.mxu0
      %v432 = vadd.f32 %v284, %v431
      %v433 = vpop.f32.mrf.mxu0
      %434 = vmatprep.mubr.bf16.mxu0 0
      %435 = vmatmul.mubr.bf16.gmra.mxu0 %v311
      %v436 = vpop.f32.mrf.mxu0
      %v437 = vadd.f32 %v284, %v436
      %v438 = vpop.f32.mrf.mxu0
      %v439 = vpop.f32.mrf.mxu0
      %v440 = vadd.f32 %v284, %v439
      %v441 = vpop.f32.mrf.mxu0
      %442 = vmatprep.mubr.bf16.mxu0 0
      %443 = vmatmul.mubr.bf16.gmra.mxu0 %v314
      %v444 = vpop.f32.mrf.mxu0
      %v445 = vadd.f32 %v284, %v444
      %v446 = vpop.f32.mrf.mxu0
      %v447 = vpop.f32.mrf.mxu0
      %v448 = vadd.f32 %v284, %v447
      %v449 = vpop.f32.mrf.mxu0
      %450 = vmatprep.mubr.bf16.mxu0 0
      %451 = vmatmul.mubr.bf16.gmra.mxu0 %v317
      %v452 = vpop.f32.mrf.mxu0
      %v453 = vadd.f32 %v284, %v452
      %v454 = vpop.f32.mrf.mxu0
      %v455 = vpop.f32.mrf.mxu0
      %v456 = vadd.f32 %v284, %v455
      %v457 = vpop.f32.mrf.mxu0
      %458 = vmatprep.mubr.bf16.mxu0 0
      %459 = vmatmul.mubr.bf16.gmra.mxu0 %v320
      %v460 = vpop.f32.mrf.mxu0
      %v461 = vadd.f32 %v284, %v460
      %v462 = vpop.f32.mrf.mxu0
      %v463 = vpop.f32.mrf.mxu0
      %v464 = vadd.f32 %v284, %v463
      %v465 = vpop.f32.mrf.mxu0
      %466 = vmatprep.mubr.bf16.mxu0 0
      %467 = vmatmul.mubr.bf16.gmra.mxu0 %v323
      %v468 = vpop.f32.mrf.mxu0
      %v469 = vadd.f32 %v284, %v468
      %v470 = vpop.f32.mrf.mxu0
      %v471 = vpop.f32.mrf.mxu0
      %v472 = vadd.f32 %v284, %v471
      %v473 = vpop.f32.mrf.mxu0
      %474 = vmatprep.mubr.bf16.mxu0 0
      %475 = vmatmul.mubr.bf16.gmra.mxu0 %v326
      %v476 = vpop.f32.mrf.mxu0
      %v477 = vadd.f32 %v284, %v476
      %v478 = vpop.f32.mrf.mxu0
      %v479 = vpop.f32.mrf.mxu0
      %v480 = vadd.f32 %v284, %v479
      %v481 = vpop.f32.mrf.mxu0
      %482 = vmatprep.mubr.bf16.mxu0 0
      %483 = vmatmul.mubr.bf16.gmra.mxu0 %v329
      %v484 = vpop.f32.mrf.mxu0
      %v485 = vadd.f32 %v284, %v484
      %v486 = vpop.f32.mrf.mxu0
      %v487 = vpop.f32.mrf.mxu0
      %v488 = vadd.f32 %v284, %v487
      %v489 = vpop.f32.mrf.mxu0
      %490 = vmatprep.mubr.bf16.mxu0 0
      %491 = vmatmul.mubr.bf16.gmra.mxu0 %v332
      %v492 = vpop.f32.mrf.mxu0
      %v493 = vadd.f32 %v284, %v492
      %v494 = vpop.f32.mrf.mxu0
      %v495 = vpop.f32.mrf.mxu0
      %v496 = vadd.f32 %v284, %v495
      %v497 = vpop.f32.mrf.mxu0
      %498 = vdwg.mxu0
      %v499 = vmax.f32 %v373, 0.0
      %v500 = vmax.f32 %v376, 0.0
      %v501 = vmax.f32 %v381, 0.0
      %v502 = vmax.f32 %v384, 0.0
      %v503 = vmax.f32 %v389, 0.0
      %v504 = vmax.f32 %v392, 0.0
      %v505 = vmax.f32 %v397, 0.0
      %v506 = vmax.f32 %v400, 0.0
      %v507 = vmax.f32 %v405, 0.0
      %v508 = vmax.f32 %v408, 0.0
      %v509 = vmax.f32 %v413, 0.0
      %v510 = vmax.f32 %v416, 0.0
      %v511 = vmax.f32 %v421, 0.0
      %v512 = vmax.f32 %v424, 0.0
      %v513 = vmax.f32 %v429, 0.0
      %v514 = vmax.f32 %v432, 0.0
      %v515 = vmax.f32 %v437, 0.0
      %v516 = vmax.f32 %v440, 0.0
      %v517 = vmax.f32 %v445, 0.0
      %v518 = vmax.f32 %v448, 0.0
      %v519 = vmax.f32 %v453, 0.0
      %v520 = vmax.f32 %v456, 0.0
      %v521 = vmax.f32 %v461, 0.0
      %v522 = vmax.f32 %v464, 0.0
      %v523 = vmax.f32 %v469, 0.0
      %v524 = vmax.f32 %v472, 0.0
      %v525 = vmax.f32 %v477, 0.0
      %v526 = vmax.f32 %v480, 0.0
      %v527 = vmax.f32 %v485, 0.0
      %v528 = vmax.f32 %v488, 0.0
      %v529 = vmax.f32 %v493, 0.0
      %v530 = vmax.f32 %v496, 0.0
      %v531 = vpack.c.bf16 %v500, %v499
      %v532 = vpack.c.bf16 %v502, %v501
      %v533 = vpack.c.bf16 %v504, %v503
      %v534 = vpack.c.bf16 %v506, %v505
      %v535 = vpack.c.bf16 %v508, %v507
      %v536 = vpack.c.bf16 %v510, %v509
      %v537 = vpack.c.bf16 %v512, %v511
      %v538 = vpack.c.bf16 %v514, %v513
      %v539 = vpack.c.bf16 %v516, %v515
      %v540 = vpack.c.bf16 %v518, %v517
      %v541 = vpack.c.bf16 %v520, %v519
      %v542 = vpack.c.bf16 %v522, %v521
      %v543 = vpack.c.bf16 %v524, %v523
      %v544 = vpack.c.bf16 %v526, %v525
      %v545 = vpack.c.bf16 %v528, %v527
      %v546 = vpack.c.bf16 %v530, %v529
      %v547 = vld [vmem:[%s2] sm:$0xf]
      %v548 = vld [vmem:[%s2 + $0x4] sm:$0xf]
      %v549 = vld [vmem:[%s2 + $0x8] sm:$0xf]
      %v550 = vld [vmem:[%s2 + $0xc] sm:$0xf]
      %v551 = vld [vmem:[%s2 + $0x10] sm:$0xf]
      %v552 = vld [vmem:[%s2 + $0x14] sm:$0xf]
      %v553 = vld [vmem:[%s2 + $0x18] sm:$0xf]
      %v554 = vld [vmem:[%s2 + $0x1c] sm:$0xf]
      %v555 = vld [vmem:[%s2 + $0x20] sm:$0xf]
      %v556 = vld [vmem:[%s2 + $0x24] sm:$0xf]
      %v557 = vld [vmem:[%s2 + $0x28] sm:$0xf]
      %v558 = vld [vmem:[%s2 + $0x2c] sm:$0xf]
      %v559 = vld [vmem:[%s2 + $0x30] sm:$0xf]
      %v560 = vld [vmem:[%s2 + $0x34] sm:$0xf]
      %v561 = vld [vmem:[%s2 + $0x38] sm:$0xf]
      %v562 = vld [vmem:[%s2 + $0x3c] sm:$0xf]
      %v563 = vlaneseq
      %v564 = vshrl.u32 %v563, 7
      %v565 = vsub.s32 0, %v564
      %v566 = vrot.slane %v230, %v565
      %v583 = vunpack.c.l.b16 %v547
      %v584 = vunpack.c.l.b16 %v548
      %v585 = vunpack.c.l.b16 %v549
      %v586 = vunpack.c.l.b16 %v550
      %v587 = vunpack.c.l.b16 %v551
      %v588 = vunpack.c.l.b16 %v552
      %v589 = vunpack.c.l.b16 %v553
      %v590 = vunpack.c.l.b16 %v554
      %v591 = vunpack.c.l.b16 %v555
      %v592 = vunpack.c.l.b16 %v556
      %v593 = vunpack.c.l.b16 %v557
      %v594 = vunpack.c.l.b16 %v558
      %v595 = vunpack.c.l.b16 %v559
      %v596 = vunpack.c.l.b16 %v560
      %v597 = vunpack.c.l.b16 %v561
      %v598 = vunpack.c.l.b16 %v562
      %v599 = vpack.c.b16 %v584, %v583
      %v600 = vpack.c.b16 %v586, %v585
      %v601 = vpack.c.b16 %v588, %v587
      %v602 = vpack.c.b16 %v590, %v589
      %v603 = vpack.c.b16 %v592, %v591
      %v604 = vpack.c.b16 %v594, %v593
      %v605 = vpack.c.b16 %v596, %v595
      %v606 = vpack.c.b16 %v598, %v597
      %615 = vmatprep.subr.bf16.mxu0 0
      %616 = vmatpush1.bf16.msra.mxu0 %v606
      %617 = vmatprep.subr.bf16.mxu0 0
      %618 = vmatpush1.bf16.msra.mxu0 %v605
      %619 = vmatprep.subr.bf16.mxu0 0
      %620 = vmatpush1.bf16.msra.mxu0 %v604
      %621 = vmatprep.subr.bf16.mxu0 0
      %622 = vmatpush1.bf16.msra.mxu0 %v603
      %623 = vmatprep.subr.bf16.mxu0 0
      %624 = vmatpush1.bf16.msra.mxu0 %v602
      %625 = vmatprep.subr.bf16.mxu0 0
      %626 = vmatpush1.bf16.msra.mxu0 %v601
      %627 = vmatprep.subr.bf16.mxu0 0
      %628 = vmatpush1.bf16.msra.mxu0 %v600
      %629 = vmatprep.subr.bf16.mxu0 0
      %630 = vmatpush1.bf16.msra.mxu0 %v599
      %631 = vmatprep.subr.bf16.mxu0 0
      %632 = vmatpush2.bf16.msra.mxu0 0
      %633 = vmatprep.subr.bf16.mxu0 0
      %634 = vmatpush2.bf16.msra.mxu0 0
      %635 = vmatprep.subr.bf16.mxu0 0
      %636 = vmatpush2.bf16.msra.mxu0 0
      %637 = vmatprep.subr.bf16.mxu0 0
      %638 = vmatpush2.bf16.msra.mxu0 0
      %639 = vmatprep.subr.bf16.mxu0 0
      %640 = vmatpush2.bf16.msra.mxu0 0
      %641 = vmatprep.subr.bf16.mxu0 0
      %642 = vmatpush2.bf16.msra.mxu0 0
      %643 = vmatprep.subr.bf16.mxu0 0
      %644 = vmatpush2.bf16.msra.mxu0 0
      %645 = vmatprep.subr.bf16.mxu0 0
      %646 = vmatpush2.bf16.msra.mxu0 0
      %647 = vmatprep.mubr.bf16.mxu0 0
      %648 = vmatmul.mubr.bf16.gmra.mxu0 %v531
      %v649 = vpop.f32.mrf.mxu0
      %v650 = vadd.f32 %v566, %v649
      %v651 = vpop.f32.mrf.mxu0
      %v652 = vpop.f32.mrf.mxu0
      %v653 = vadd.f32 %v566, %v652
      %v654 = vpop.f32.mrf.mxu0
      %655 = vmatprep.mubr.bf16.mxu0 0
      %656 = vmatmul.mubr.bf16.gmra.mxu0 %v532
      %v657 = vpop.f32.mrf.mxu0
      %v658 = vadd.f32 %v566, %v657
      %v659 = vpop.f32.mrf.mxu0
      %v660 = vpop.f32.mrf.mxu0
      %v661 = vadd.f32 %v566, %v660
      %v662 = vpop.f32.mrf.mxu0
      %663 = vmatprep.mubr.bf16.mxu0 0
      %664 = vmatmul.mubr.bf16.gmra.mxu0 %v533
      %v665 = vpop.f32.mrf.mxu0
      %v666 = vadd.f32 %v566, %v665
      %v667 = vpop.f32.mrf.mxu0
      %v668 = vpop.f32.mrf.mxu0
      %v669 = vadd.f32 %v566, %v668
      %v670 = vpop.f32.mrf.mxu0
      %671 = vmatprep.mubr.bf16.mxu0 0
      %672 = vmatmul.mubr.bf16.gmra.mxu0 %v534
      %v673 = vpop.f32.mrf.mxu0
      %v674 = vadd.f32 %v566, %v673
      %v675 = vpop.f32.mrf.mxu0
      %v676 = vpop.f32.mrf.mxu0
      %v677 = vadd.f32 %v566, %v676
      %v678 = vpop.f32.mrf.mxu0
      %679 = vmatprep.mubr.bf16.mxu0 0
      %680 = vmatmul.mubr.bf16.gmra.mxu0 %v535
      %v681 = vpop.f32.mrf.mxu0
      %v682 = vadd.f32 %v566, %v681
      %v683 = vpop.f32.mrf.mxu0
      %v684 = vpop.f32.mrf.mxu0
      %v685 = vadd.f32 %v566, %v684
      %v686 = vpop.f32.mrf.mxu0
      %687 = vmatprep.mubr.bf16.mxu0 0
      %688 = vmatmul.mubr.bf16.gmra.mxu0 %v536
      %v689 = vpop.f32.mrf.mxu0
      %v690 = vadd.f32 %v566, %v689
      %v691 = vpop.f32.mrf.mxu0
      %v692 = vpop.f32.mrf.mxu0
      %v693 = vadd.f32 %v566, %v692
      %v694 = vpop.f32.mrf.mxu0
      %695 = vmatprep.mubr.bf16.mxu0 0
      %696 = vmatmul.mubr.bf16.gmra.mxu0 %v537
      %v697 = vpop.f32.mrf.mxu0
      %v698 = vadd.f32 %v566, %v697
      %v699 = vpop.f32.mrf.mxu0
      %v700 = vpop.f32.mrf.mxu0
      %v701 = vadd.f32 %v566, %v700
      %v702 = vpop.f32.mrf.mxu0
      %703 = vmatprep.mubr.bf16.mxu0 0
      %704 = vmatmul.mubr.bf16.gmra.mxu0 %v538
      %v705 = vpop.f32.mrf.mxu0
      %v706 = vadd.f32 %v566, %v705
      %v707 = vpop.f32.mrf.mxu0
      %v708 = vpop.f32.mrf.mxu0
      %v709 = vadd.f32 %v566, %v708
      %v710 = vpop.f32.mrf.mxu0
      %711 = vmatprep.mubr.bf16.mxu0 0
      %712 = vmatmul.mubr.bf16.gmra.mxu0 %v539
      %v713 = vpop.f32.mrf.mxu0
      %v714 = vadd.f32 %v566, %v713
      %v715 = vpop.f32.mrf.mxu0
      %v716 = vpop.f32.mrf.mxu0
      %v717 = vadd.f32 %v566, %v716
      %v718 = vpop.f32.mrf.mxu0
      %719 = vmatprep.mubr.bf16.mxu0 0
      %720 = vmatmul.mubr.bf16.gmra.mxu0 %v540
      %v721 = vpop.f32.mrf.mxu0
      %v722 = vadd.f32 %v566, %v721
      %v723 = vpop.f32.mrf.mxu0
      %v724 = vpop.f32.mrf.mxu0
      %v725 = vadd.f32 %v566, %v724
      %v726 = vpop.f32.mrf.mxu0
      %727 = vmatprep.mubr.bf16.mxu0 0
      %728 = vmatmul.mubr.bf16.gmra.mxu0 %v541
      %v729 = vpop.f32.mrf.mxu0
      %v730 = vadd.f32 %v566, %v729
      %v731 = vpop.f32.mrf.mxu0
      %v732 = vpop.f32.mrf.mxu0
      %v733 = vadd.f32 %v566, %v732
      %v734 = vpop.f32.mrf.mxu0
      %735 = vmatprep.mubr.bf16.mxu0 0
      %736 = vmatmul.mubr.bf16.gmra.mxu0 %v542
      %v737 = vpop.f32.mrf.mxu0
      %v738 = vadd.f32 %v566, %v737
      %v739 = vpop.f32.mrf.mxu0
      %v740 = vpop.f32.mrf.mxu0
      %v741 = vadd.f32 %v566, %v740
      %v742 = vpop.f32.mrf.mxu0
      %743 = vmatprep.mubr.bf16.mxu0 0
      %744 = vmatmul.mubr.bf16.gmra.mxu0 %v543
      %v745 = vpop.f32.mrf.mxu0
      %v746 = vadd.f32 %v566, %v745
      %v747 = vpop.f32.mrf.mxu0
      %v748 = vpop.f32.mrf.mxu0
      %v749 = vadd.f32 %v566, %v748
      %v750 = vpop.f32.mrf.mxu0
      %751 = vmatprep.mubr.bf16.mxu0 0
      %752 = vmatmul.mubr.bf16.gmra.mxu0 %v544
      %v753 = vpop.f32.mrf.mxu0
      %v754 = vadd.f32 %v566, %v753
      %v755 = vpop.f32.mrf.mxu0
      %v756 = vpop.f32.mrf.mxu0
      %v757 = vadd.f32 %v566, %v756
      %v758 = vpop.f32.mrf.mxu0
      %759 = vmatprep.mubr.bf16.mxu0 0
      %760 = vmatmul.mubr.bf16.gmra.mxu0 %v545
      %v761 = vpop.f32.mrf.mxu0
      %v762 = vadd.f32 %v566, %v761
      %v763 = vpop.f32.mrf.mxu0
      %v764 = vpop.f32.mrf.mxu0
      %v765 = vadd.f32 %v566, %v764
      %v766 = vpop.f32.mrf.mxu0
      %767 = vmatprep.mubr.bf16.mxu0 0
      %768 = vmatmul.mubr.bf16.gmra.mxu0 %v546
      %v769 = vpop.f32.mrf.mxu0
      %v770 = vadd.f32 %v566, %v769
      %v771 = vpop.f32.mrf.mxu0
      %v772 = vpop.f32.mrf.mxu0
      %v773 = vadd.f32 %v566, %v772
      %v774 = vpop.f32.mrf.mxu0
      %775 = vdwg.mxu0
      %v776 = vmax.f32 %v650, 0.0
      %v777 = vmax.f32 %v653, 0.0
      %v778 = vmax.f32 %v658, 0.0
      %v779 = vmax.f32 %v661, 0.0
      %v780 = vmax.f32 %v666, 0.0
      %v781 = vmax.f32 %v669, 0.0
      %v782 = vmax.f32 %v674, 0.0
      %v783 = vmax.f32 %v677, 0.0
      %v784 = vmax.f32 %v682, 0.0
      %v785 = vmax.f32 %v685, 0.0
      %v786 = vmax.f32 %v690, 0.0
      %v787 = vmax.f32 %v693, 0.0
      %v788 = vmax.f32 %v698, 0.0
      %v789 = vmax.f32 %v701, 0.0
      %v790 = vmax.f32 %v706, 0.0
      %v791 = vmax.f32 %v709, 0.0
      %v792 = vmax.f32 %v714, 0.0
      %v793 = vmax.f32 %v717, 0.0
      %v794 = vmax.f32 %v722, 0.0
      %v795 = vmax.f32 %v725, 0.0
      %v796 = vmax.f32 %v730, 0.0
      %v797 = vmax.f32 %v733, 0.0
      %v798 = vmax.f32 %v738, 0.0
      %v799 = vmax.f32 %v741, 0.0
      %v800 = vmax.f32 %v746, 0.0
      %v801 = vmax.f32 %v749, 0.0
      %v802 = vmax.f32 %v754, 0.0
      %v803 = vmax.f32 %v757, 0.0
      %v804 = vmax.f32 %v762, 0.0
      %v805 = vmax.f32 %v765, 0.0
      %v806 = vmax.f32 %v770, 0.0
      %v807 = vmax.f32 %v773, 0.0
      %v808 = vpack.c.bf16 %v777, %v776
      %v809 = vpack.c.bf16 %v779, %v778
      %v810 = vpack.c.bf16 %v781, %v780
      %v811 = vpack.c.bf16 %v783, %v782
      %v812 = vpack.c.bf16 %v785, %v784
      %v813 = vpack.c.bf16 %v787, %v786
      %v814 = vpack.c.bf16 %v789, %v788
      %v815 = vpack.c.bf16 %v791, %v790
      %v816 = vpack.c.bf16 %v793, %v792
      %v817 = vpack.c.bf16 %v795, %v794
      %v818 = vpack.c.bf16 %v797, %v796
      %v819 = vpack.c.bf16 %v799, %v798
      %v820 = vpack.c.bf16 %v801, %v800
      %v821 = vpack.c.bf16 %v803, %v802
      %v822 = vpack.c.bf16 %v805, %v804
      %v823 = vpack.c.bf16 %v807, %v806
      %v824 = vld [vmem:[%s3] sm:$0xf]
      %v825 = vld [vmem:[%s3 + $0x4] sm:$0xf]
      %v826 = vld [vmem:[%s3 + $0x8] sm:$0xf]
      %v827 = vld [vmem:[%s3 + $0xc] sm:$0xf]
      %v828 = vld [vmem:[%s3 + $0x10] sm:$0xf]
      %v829 = vld [vmem:[%s3 + $0x14] sm:$0xf]
      %v830 = vld [vmem:[%s3 + $0x18] sm:$0xf]
      %v831 = vld [vmem:[%s3 + $0x1c] sm:$0xf]
      %v832 = vld [vmem:[%s3 + $0x20] sm:$0xf]
      %v833 = vld [vmem:[%s3 + $0x24] sm:$0xf]
      %v834 = vld [vmem:[%s3 + $0x28] sm:$0xf]
      %v835 = vld [vmem:[%s3 + $0x2c] sm:$0xf]
      %v836 = vld [vmem:[%s3 + $0x30] sm:$0xf]
      %v837 = vld [vmem:[%s3 + $0x34] sm:$0xf]
      %v838 = vld [vmem:[%s3 + $0x38] sm:$0xf]
      %v839 = vld [vmem:[%s3 + $0x3c] sm:$0xf]
      %v840 = vlaneseq
      %v841 = vshrl.u32 %v840, 7
      %v842 = vsub.s32 0, %v841
      %v843 = vrot.slane %v231, %v842
      %v860 = vunpack.c.l.b16 %v824
      %v861 = vunpack.c.l.b16 %v825
      %v862 = vunpack.c.l.b16 %v826
      %v863 = vunpack.c.l.b16 %v827
      %v864 = vunpack.c.l.b16 %v828
      %v865 = vunpack.c.l.b16 %v829
      %v866 = vunpack.c.l.b16 %v830
      %v867 = vunpack.c.l.b16 %v831
      %v868 = vunpack.c.l.b16 %v832
      %v869 = vunpack.c.l.b16 %v833
      %v870 = vunpack.c.l.b16 %v834
      %v871 = vunpack.c.l.b16 %v835
      %v872 = vunpack.c.l.b16 %v836
      %v873 = vunpack.c.l.b16 %v837
      %v874 = vunpack.c.l.b16 %v838
      %v875 = vunpack.c.l.b16 %v839
      %v876 = vpack.c.b16 %v861, %v860
      %v877 = vpack.c.b16 %v863, %v862
      %v878 = vpack.c.b16 %v865, %v864
      %v879 = vpack.c.b16 %v867, %v866
      %v880 = vpack.c.b16 %v869, %v868
      %v881 = vpack.c.b16 %v871, %v870
      %v882 = vpack.c.b16 %v873, %v872
      %v883 = vpack.c.b16 %v875, %v874
      %892 = vmatprep.subr.bf16.mxu0 0
      %893 = vmatpush1.bf16.msra.mxu0 %v883
      %894 = vmatprep.subr.bf16.mxu0 0
      %895 = vmatpush1.bf16.msra.mxu0 %v882
      %896 = vmatprep.subr.bf16.mxu0 0
      %897 = vmatpush1.bf16.msra.mxu0 %v881
      %898 = vmatprep.subr.bf16.mxu0 0
      %899 = vmatpush1.bf16.msra.mxu0 %v880
      %900 = vmatprep.subr.bf16.mxu0 0
      %901 = vmatpush1.bf16.msra.mxu0 %v879
      %902 = vmatprep.subr.bf16.mxu0 0
      %903 = vmatpush1.bf16.msra.mxu0 %v878
      %904 = vmatprep.subr.bf16.mxu0 0
      %905 = vmatpush1.bf16.msra.mxu0 %v877
      %906 = vmatprep.subr.bf16.mxu0 0
      %907 = vmatpush1.bf16.msra.mxu0 %v876
      %908 = vmatprep.subr.bf16.mxu0 0
      %909 = vmatpush2.bf16.msra.mxu0 0
      %910 = vmatprep.subr.bf16.mxu0 0
      %911 = vmatpush2.bf16.msra.mxu0 0
      %912 = vmatprep.subr.bf16.mxu0 0
      %913 = vmatpush2.bf16.msra.mxu0 0
      %914 = vmatprep.subr.bf16.mxu0 0
      %915 = vmatpush2.bf16.msra.mxu0 0
      %916 = vmatprep.subr.bf16.mxu0 0
      %917 = vmatpush2.bf16.msra.mxu0 0
      %918 = vmatprep.subr.bf16.mxu0 0
      %919 = vmatpush2.bf16.msra.mxu0 0
      %920 = vmatprep.subr.bf16.mxu0 0
      %921 = vmatpush2.bf16.msra.mxu0 0
      %922 = vmatprep.subr.bf16.mxu0 0
      %923 = vmatpush2.bf16.msra.mxu0 0
      %924 = vmatprep.mubr.bf16.mxu0 0
      %925 = vmatmul.mubr.bf16.gmra.mxu0 %v808
      %v926 = vpop.f32.mrf.mxu0
      %v927 = vadd.f32 %v843, %v926
      %v928 = vpop.f32.mrf.mxu0
      %v929 = vpop.f32.mrf.mxu0
      %v930 = vadd.f32 %v843, %v929
      %v931 = vpop.f32.mrf.mxu0
      %932 = vmatprep.mubr.bf16.mxu0 0
      %933 = vmatmul.mubr.bf16.gmra.mxu0 %v809
      %v934 = vpop.f32.mrf.mxu0
      %v935 = vadd.f32 %v843, %v934
      %v936 = vpop.f32.mrf.mxu0
      %v937 = vpop.f32.mrf.mxu0
      %v938 = vadd.f32 %v843, %v937
      %v939 = vpop.f32.mrf.mxu0
      %940 = vmatprep.mubr.bf16.mxu0 0
      %941 = vmatmul.mubr.bf16.gmra.mxu0 %v810
      %v942 = vpop.f32.mrf.mxu0
      %v943 = vadd.f32 %v843, %v942
      %v944 = vpop.f32.mrf.mxu0
      %v945 = vpop.f32.mrf.mxu0
      %v946 = vadd.f32 %v843, %v945
      %v947 = vpop.f32.mrf.mxu0
      %948 = vmatprep.mubr.bf16.mxu0 0
      %949 = vmatmul.mubr.bf16.gmra.mxu0 %v811
      %v950 = vpop.f32.mrf.mxu0
      %v951 = vadd.f32 %v843, %v950
      %v952 = vpop.f32.mrf.mxu0
      %v953 = vpop.f32.mrf.mxu0
      %v954 = vadd.f32 %v843, %v953
      %v955 = vpop.f32.mrf.mxu0
      %956 = vmatprep.mubr.bf16.mxu0 0
      %957 = vmatmul.mubr.bf16.gmra.mxu0 %v812
      %v958 = vpop.f32.mrf.mxu0
      %v959 = vadd.f32 %v843, %v958
      %v960 = vpop.f32.mrf.mxu0
      %v961 = vpop.f32.mrf.mxu0
      %v962 = vadd.f32 %v843, %v961
      %v963 = vpop.f32.mrf.mxu0
      %964 = vmatprep.mubr.bf16.mxu0 0
      %965 = vmatmul.mubr.bf16.gmra.mxu0 %v813
      %v966 = vpop.f32.mrf.mxu0
      %v967 = vadd.f32 %v843, %v966
      %v968 = vpop.f32.mrf.mxu0
      %v969 = vpop.f32.mrf.mxu0
      %v970 = vadd.f32 %v843, %v969
      %v971 = vpop.f32.mrf.mxu0
      %972 = vmatprep.mubr.bf16.mxu0 0
      %973 = vmatmul.mubr.bf16.gmra.mxu0 %v814
      %v974 = vpop.f32.mrf.mxu0
      %v975 = vadd.f32 %v843, %v974
      %v976 = vpop.f32.mrf.mxu0
      %v977 = vpop.f32.mrf.mxu0
      %v978 = vadd.f32 %v843, %v977
      %v979 = vpop.f32.mrf.mxu0
      %980 = vmatprep.mubr.bf16.mxu0 0
      %981 = vmatmul.mubr.bf16.gmra.mxu0 %v815
      %v982 = vpop.f32.mrf.mxu0
      %v983 = vadd.f32 %v843, %v982
      %v984 = vpop.f32.mrf.mxu0
      %v985 = vpop.f32.mrf.mxu0
      %v986 = vadd.f32 %v843, %v985
      %v987 = vpop.f32.mrf.mxu0
      %988 = vmatprep.mubr.bf16.mxu0 0
      %989 = vmatmul.mubr.bf16.gmra.mxu0 %v816
      %v990 = vpop.f32.mrf.mxu0
      %v991 = vadd.f32 %v843, %v990
      %v992 = vpop.f32.mrf.mxu0
      %v993 = vpop.f32.mrf.mxu0
      %v994 = vadd.f32 %v843, %v993
      %v995 = vpop.f32.mrf.mxu0
      %996 = vmatprep.mubr.bf16.mxu0 0
      %997 = vmatmul.mubr.bf16.gmra.mxu0 %v817
      %v998 = vpop.f32.mrf.mxu0
      %v999 = vadd.f32 %v843, %v998
      %v1000 = vpop.f32.mrf.mxu0
      %v1001 = vpop.f32.mrf.mxu0
      %v1002 = vadd.f32 %v843, %v1001
      %v1003 = vpop.f32.mrf.mxu0
      %1004 = vmatprep.mubr.bf16.mxu0 0
      %1005 = vmatmul.mubr.bf16.gmra.mxu0 %v818
      %v1006 = vpop.f32.mrf.mxu0
      %v1007 = vadd.f32 %v843, %v1006
      %v1008 = vpop.f32.mrf.mxu0
      %v1009 = vpop.f32.mrf.mxu0
      %v1010 = vadd.f32 %v843, %v1009
      %v1011 = vpop.f32.mrf.mxu0
      %1012 = vmatprep.mubr.bf16.mxu0 0
      %1013 = vmatmul.mubr.bf16.gmra.mxu0 %v819
      %v1014 = vpop.f32.mrf.mxu0
      %v1015 = vadd.f32 %v843, %v1014
      %v1016 = vpop.f32.mrf.mxu0
      %v1017 = vpop.f32.mrf.mxu0
      %v1018 = vadd.f32 %v843, %v1017
      %v1019 = vpop.f32.mrf.mxu0
      %1020 = vmatprep.mubr.bf16.mxu0 0
      %1021 = vmatmul.mubr.bf16.gmra.mxu0 %v820
      %v1022 = vpop.f32.mrf.mxu0
      %v1023 = vadd.f32 %v843, %v1022
      %v1024 = vpop.f32.mrf.mxu0
      %v1025 = vpop.f32.mrf.mxu0
      %v1026 = vadd.f32 %v843, %v1025
      %v1027 = vpop.f32.mrf.mxu0
      %1028 = vmatprep.mubr.bf16.mxu0 0
      %1029 = vmatmul.mubr.bf16.gmra.mxu0 %v821
      %v1030 = vpop.f32.mrf.mxu0
      %v1031 = vadd.f32 %v843, %v1030
      %v1032 = vpop.f32.mrf.mxu0
      %v1033 = vpop.f32.mrf.mxu0
      %v1034 = vadd.f32 %v843, %v1033
      %v1035 = vpop.f32.mrf.mxu0
      %1036 = vmatprep.mubr.bf16.mxu0 0
      %1037 = vmatmul.mubr.bf16.gmra.mxu0 %v822
      %v1038 = vpop.f32.mrf.mxu0
      %v1039 = vadd.f32 %v843, %v1038
      %v1040 = vpop.f32.mrf.mxu0
      %v1041 = vpop.f32.mrf.mxu0
      %v1042 = vadd.f32 %v843, %v1041
      %v1043 = vpop.f32.mrf.mxu0
      %1044 = vmatprep.mubr.bf16.mxu0 0
      %1045 = vmatmul.mubr.bf16.gmra.mxu0 %v823
      %v1046 = vpop.f32.mrf.mxu0
      %v1047 = vadd.f32 %v843, %v1046
      %v1048 = vpop.f32.mrf.mxu0
      %v1049 = vpop.f32.mrf.mxu0
      %v1050 = vadd.f32 %v843, %v1049
      %v1051 = vpop.f32.mrf.mxu0
      %1052 = vdwg.mxu0
      %1053 = vst [vmem:[%s226] sm:$0xff] %v927
      %1054 = vst [vmem:[%s226 + $0x8] sm:$0xff] %v930
      %1055 = vst [vmem:[%s226 + $0x10] sm:$0xff] %v935
      %1056 = vst [vmem:[%s226 + $0x18] sm:$0xff] %v938
      %1057 = vst [vmem:[%s226 + $0x20] sm:$0xff] %v943
      %1058 = vst [vmem:[%s226 + $0x28] sm:$0xff] %v946
      %1059 = vst [vmem:[%s226 + $0x30] sm:$0xff] %v951
      %1060 = vst [vmem:[%s226 + $0x38] sm:$0xff] %v954
      %1061 = vst [vmem:[%s226 + $0x40] sm:$0xff] %v959
      %1062 = vst [vmem:[%s226 + $0x48] sm:$0xff] %v962
      %1063 = vst [vmem:[%s226 + $0x50] sm:$0xff] %v967
      %1064 = vst [vmem:[%s226 + $0x58] sm:$0xff] %v970
      %1065 = vst [vmem:[%s226 + $0x60] sm:$0xff] %v975
      %1066 = vst [vmem:[%s226 + $0x68] sm:$0xff] %v978
      %1067 = vst [vmem:[%s226 + $0x70] sm:$0xff] %v983
      %1068 = vst [vmem:[%s226 + $0x78] sm:$0xff] %v986
      %1069 = vst [vmem:[%s226 + $0x80] sm:$0xff] %v991
      %1070 = vst [vmem:[%s226 + $0x88] sm:$0xff] %v994
      %1071 = vst [vmem:[%s226 + $0x90] sm:$0xff] %v999
      %1072 = vst [vmem:[%s226 + $0x98] sm:$0xff] %v1002
      %1073 = vst [vmem:[%s226 + $0xa0] sm:$0xff] %v1007
      %1074 = vst [vmem:[%s226 + $0xa8] sm:$0xff] %v1010
      %1075 = vst [vmem:[%s226 + $0xb0] sm:$0xff] %v1015
      %1076 = vst [vmem:[%s226 + $0xb8] sm:$0xff] %v1018
      %1077 = vst [vmem:[%s226 + $0xc0] sm:$0xff] %v1023
      %1078 = vst [vmem:[%s226 + $0xc8] sm:$0xff] %v1026
      %1079 = vst [vmem:[%s226 + $0xd0] sm:$0xff] %v1031
      %1080 = vst [vmem:[%s226 + $0xd8] sm:$0xff] %v1034
      %1081 = vst [vmem:[%s226 + $0xe0] sm:$0xff] %v1039
      %1082 = vst [vmem:[%s226 + $0xe8] sm:$0xff] %v1042
      %1083 = vst [vmem:[%s226 + $0xf0] sm:$0xff] %v1047
      %1084 = vst [vmem:[%s226 + $0xf8] sm:$0xff] %v1050
      %s1085 = smul.u32 32, %s16
      %p1086 = scmp.lt.s32.totalorder %s1085, 63
      %s1087 = scalar_select %p1086, %s1085, 63
      %s1088 = smul.addr %s1087, 8
      %s1089 = scalar_lea.vmem %s5, %s1088
      // Predicated region
      $region41: #{qnetwork_forward.1} parent=39 // pred_check
        %p1090 = pneg %p144
      $region42: #{qnetwork_forward.1} parent=39 // pred_check_branch
        %1092 = sbr.rel (%p1090) target = $region44
      $region43: #{qnetwork_forward.1} parent=39 // pred_region
        %s1093 = smul.u32 32, %s16
      $region44: #{qnetwork_forward.1} parent=39 // pred_fallthru
        _
    $region40: #{qnetwork_forward.1} parent=5 // pred_fallthru
      _
    %p1094 = scmp.le.s32.totalorder 2, %s11
    // Predicated region
    $region45: #{qnetwork_forward.1} parent=5 // pred_check
      %p1095 = pneg %p1094
    $region46: #{qnetwork_forward.1} parent=5 // pred_check_branch
      %1097 = sbr.rel (%p1095) target = $region48
    $region47: #{qnetwork_forward.1} parent=5 // pred_region
      %s1098 = ssub.s32 %s11, 2
      // Predicated region
      $region49: #{qnetwork_forward.1} parent=47 // pred_check
        %p1099 = pneg %p150
      $region50: #{qnetwork_forward.1} parent=47 // pred_check_branch
        %1101 = sbr.rel (%p1099) target = $region52
      $region51: #{qnetwork_forward.1} parent=47 // pred_region
        %s1102 = smul.u32 32, %s17
        %p1103 = scmp.lt.s32.totalorder %s1102, 63
        %s1104 = scalar_select %p1103, %s1102, 63
        %s1105 = smul.addr %s1104, 8
        %s1106 = scalar_lea.vmem %s5, %s1105
      $region52: #{qnetwork_forward.1} parent=47 // pred_fallthru
        _
    $region48: #{qnetwork_forward.1} parent=5 // pred_fallthru
      _
  $region6: #{qnetwork_forward.1} parent=0 // loop_footer
    %s15 = sadd.s32 1, %s11
  $region7: #{qnetwork_forward.1} parent=0 // loop_footer_branch
    %10 = sbr.rel target = $region3
  $region8: #{qnetwork_forward.1} parent=0 // loop_exit
    _

</llo_original>
